<compile_context>
chip_gen: v7x
topology: tpu7x:2x2x1
jax: 0.10.0
libtpu: 0.0.40
codegen_flags: <defaults>
</compile_context>

<pallas_src>
import jax
import jax.numpy as jnp
from jax import lax
from jax.experimental import pallas as pl
from jax.experimental.pallas import tpu as pltpu

_UNROLL_T_MAX = 64  # fully unroll the leaky-integrator recurrence up to this T


# ------------------------------ kernels -------------------------------------

def _readout_mean_kernel(x_ref, w_ref, inv_norm_ref, b_ref, out_ref, memrec_ref):
    # x_ref: (Bblk, T, C)  w_ref: (C, D)  inv_norm_ref/b_ref: (1, D)
    # out_ref: (Bblk, D)   memrec_ref: (Bblk, T, D)
    bblk, T, C = x_ref.shape
    D = w_ref.shape[1]
    # One big (Bblk*T, C) x (C, D) MXU matmul, native dtypes, f32 accumulate.
    x2 = x_ref[...].reshape(bblk * T, C)
    h = jnp.dot(x2, w_ref[...], preferred_element_type=jnp.float32)  # (Bblk*T, D)
    h3 = h.reshape(bblk, T, D)
    memrec_ref[...] = h3.astype(memrec_ref.dtype)                    # mem_rec = h
    mean_h = jnp.mean(h3, axis=1)                                    # (Bblk, D)
    out = mean_h * inv_norm_ref[...] - b_ref[...].astype(jnp.float32)
    out_ref[...] = out.astype(out_ref.dtype)


def _readout_max_kernel(x_ref, w_ref, inv_norm_ref, b_ref, beta_ref,
                        out_ref, memrec_ref):
    # x_ref: (Bblk, T, C)  w_ref: (C, D)  inv_norm_ref/b_ref: (1, D)
    # beta_ref: SMEM (1,)  out_ref: (Bblk, D)  memrec_ref: (Bblk, T, D)
    bblk, T, C = x_ref.shape
    D = w_ref.shape[1]
    x2 = x_ref[...].reshape(bblk * T, C)
    h = jnp.dot(x2, w_ref[...], preferred_element_type=jnp.float32)  # (Bblk*T, D)
    h3 = h.reshape(bblk, T, D)

    beta = beta_ref[0].astype(jnp.float32)
    one_minus_beta = 1.0 - beta                                      # hoisted

    if T <= _UNROLL_T_MAX:
        # Fully unrolled, batch-vectorized recurrence; one dense mem_rec store.
        mem = jnp.zeros((bblk, D), jnp.float32)
        mems = []
        for t in range(T):
            mem = mem * beta + one_minus_beta * h3[:, t, :]
            mems.append(mem)
        mem_rec = jnp.stack(mems, axis=1)                            # (Bblk, T, D)
        memrec_ref[...] = mem_rec.astype(memrec_ref.dtype)
        mx = jnp.max(mem_rec, axis=1)                                # (Bblk, D)
    else:
        # Long-T fallback: rolled loop with a batch-vectorized (Bblk, D) carry.
        def body(t, carry):
            mem, mx = carry
            h_t = lax.dynamic_slice_in_dim(h3, t, 1, axis=1)[:, 0, :]
            mem = mem * beta + one_minus_beta * h_t
            memrec_ref[:, pl.ds(t, 1), :] = mem[:, None, :].astype(memrec_ref.dtype)
            return mem, jnp.maximum(mx, mem)

        mem0 = jnp.zeros((bblk, D), jnp.float32)
        mx0 = jnp.full((bblk, D), -jnp.inf, jnp.float32)
        _, mx = lax.fori_loop(0, T, body, (mem0, mx0))

    out = mx * inv_norm_ref[...] - b_ref[...].astype(jnp.float32)
    out_ref[...] = out.astype(out_ref.dtype)


# ------------------------------ wrapper --------------------------------------

def _choose_bblk(B, T, C, D, itemsize):
    """Pick a batch block so Bblk*T >= ~256 MXU rows, sublane-aligned, VMEM-safe."""
    target = max(1, pl.cdiv(256, max(T, 1)))
    # Keep a double-buffered block comfortably small (<~8 MiB per buffer set).
    per_row_bytes = max(1, T * (C + 2 * D) * itemsize)
    target = min(target, max(1, (8 * 1024 * 1024) // per_row_bytes))
    if B <= target:
        return B                      # block equals full batch dim
    return max(8, (target // 8) * 8)  # otherwise keep it a multiple of 8


def readout_forward(x, w, b, beta=None, time_reduction='mean', eps=1e-8):
    assert time_reduction in ('mean', 'max')
    B, T, C = x.shape
    D = w.shape[1]

    # Hoisted epilogue constants (computed once, outside the kernel).
    inv_norm = (1.0 / (jnp.sum(w.astype(jnp.float32) ** 2, axis=0) + eps)
                ).reshape(1, D)
    b2 = b.reshape(1, D)

    bblk = _choose_bblk(B, T, C, D, jnp.dtype(x.dtype).itemsize)
    Bp = pl.cdiv(B, bblk) * bblk
    xp = x if Bp == B else jnp.pad(x, ((0, Bp - B), (0, 0), (0, 0)))
    grid = (Bp // bblk,)

    x_spec = pl.BlockSpec((bblk, T, C), lambda i: (i, 0, 0))
    w_spec = pl.BlockSpec((C, D), lambda i: (0, 0))
    vec_spec = pl.BlockSpec((1, D), lambda i: (0, 0))
    out_spec = pl.BlockSpec((bblk, D), lambda i: (i, 0))
    memrec_spec = pl.BlockSpec((bblk, T, D), lambda i: (i, 0, 0))

    out_shape = (jax.ShapeDtypeStruct((Bp, D), x.dtype),       # output
                 jax.ShapeDtypeStruct((Bp, T, D), x.dtype))    # mem_rec
    cparams = pltpu.CompilerParams(dimension_semantics=("parallel",))

    if time_reduction == 'mean':
        out, mem_rec = pl.pallas_call(
            _readout_mean_kernel,
            out_shape=out_shape,
            grid=grid,
            in_specs=[x_spec, w_spec, vec_spec, vec_spec],
            out_specs=(out_spec, memrec_spec),
            compiler_params=cparams,
        )(xp, w, inv_norm, b2)
    else:
        beta_arr = jnp.asarray(beta, jnp.float32).reshape(1)
        beta_spec = pl.BlockSpec(memory_space=pltpu.MemorySpace.SMEM)
        out, mem_rec = pl.pallas_call(
            _readout_max_kernel,
            out_shape=out_shape,
            grid=grid,
            in_specs=[x_spec, w_spec, vec_spec, vec_spec, beta_spec],
            out_specs=(out_spec, memrec_spec),
            compiler_params=cparams,
        )(xp, w, inv_norm, b2, beta_arr)

    if Bp != B:
        out = out[:B]
        mem_rec = mem_rec[:B]
    return out, mem_rec


# ------------------------------ reference ------------------------------------

def readout_ref(x, w, b, beta=None, time_reduction='mean'):
    h = jnp.einsum('btc,cd->btd', x, w)
    norm = jnp.sum(w ** 2, axis=0)
    if time_reduction == 'mean':
        mem_rec = h
        out = jnp.mean(h, axis=1) / (norm + 1e-8) - b
    else:
        B, T, D = h.shape
        bta = jnp.asarray(beta).reshape(())

        def step(mem, h_t):
            mem = mem * bta + (1.0 - bta) * h_t
            return mem, mem

        _, mem_rec_t = lax.scan(step, jnp.zeros((B, D), x.dtype),
                                jnp.swapaxes(h, 0, 1))
        mem_rec = jnp.swapaxes(mem_rec_t, 0, 1)
        out = jnp.max(mem_rec, axis=1) / (norm + 1e-8) - b
    return out, mem_rec


# ------------------------------ main ------------------------------------------

if __name__ == "__main__":
    # Module hyperparameters (deterministic synthetic init, mirrors reset_parameters()).
    nb_inputs, nb_outputs = 32, 16
    batch, nb_steps = 2, 8
    w_init_mean, w_init_std = 0.0, 0.2

    key = jax.random.PRNGKey(0)
    kx, kw, kb, kbeta = jax.random.split(key, 4)

    x = jax.random.normal(kx, (batch, nb_steps, nb_inputs), dtype=jnp.float32)
    w = (w_init_mean
         + w_init_std * jnp.sqrt(1.0 / nb_inputs)
         * jax.random.normal(kw, (nb_inputs, nb_outputs), dtype=jnp.float32))
    b = 1.0 + 0.01 * jax.random.normal(kb, (nb_outputs,), dtype=jnp.float32)
    beta = jnp.clip(0.7 + 0.01 * jax.random.normal(kbeta, (1,), dtype=jnp.float32),
                    0.0, 1.0)

    # TODO(synk): the PyTorch module also returns loss=None and stashes
    # mem_rec_hist as a host-side numpy copy; neither has a TPU-kernel equivalent.
    ok = True
    for mode in ('mean', 'max'):
        out, mem_rec = readout_forward(x, w, b, beta=beta, time_reduction=mode)
        out = jax.block_until_ready(out)
        mem_rec = jax.block_until_ready(mem_rec)

        out_ref_v, mem_rec_ref_v = readout_ref(x, w, b, beta=beta,
                                               time_reduction=mode)
        ok &= bool(jnp.allclose(out, out_ref_v, rtol=1e-5, atol=1e-5))
        ok &= bool(jnp.allclose(mem_rec, mem_rec_ref_v, rtol=1e-5, atol=1e-5))

    if ok:
        print("KERNEL_OK")
    else:
        print("KERNEL_MISMATCH")
</pallas_src>

<mosaic_0001>
module attributes {stable_mosaic.version = 11 : i64} {
  func.func @_readout_mean_kernel(%arg0: i32, %arg1: memref<2x8x32xf32, #tpu.memory_space<vmem>>, %arg2: memref<32x16xf32, #tpu.memory_space<vmem>>, %arg3: memref<1x16xf32, #tpu.memory_space<vmem>>, %arg4: memref<1x16xf32, #tpu.memory_space<vmem>>, %arg5: memref<2x16xf32, #tpu.memory_space<vmem>>, %arg6: memref<2x8x16xf32, #tpu.memory_space<vmem>>) attributes {dimension_semantics = [#tpu.dimension_semantics<parallel>], iteration_bounds = array<i64: 1>, scalar_prefetch = 0 : i64, scratch_operands = 0 : i64, tpu.core_type = #tpu.core_type<tc>, window_params = [{transform_indices = @transform_0, window_bounds = array<i64: 2, 8, 32>}, {pipeline_mode = #tpu.pipeline_mode<synchronous>, transform_indices = @transform_1, window_bounds = array<i64: 32, 16>}, {pipeline_mode = #tpu.pipeline_mode<synchronous>, transform_indices = @transform_2, window_bounds = array<i64: 1, 16>}, {pipeline_mode = #tpu.pipeline_mode<synchronous>, transform_indices = @transform_3, window_bounds = array<i64: 1, 16>}, {transform_indices = @transform_4, window_bounds = array<i64: 2, 16>}, {transform_indices = @transform_5, window_bounds = array<i64: 2, 8, 16>}]} {
    %c0 = arith.constant 0 : index
    %c0_0 = arith.constant 0 : index
    %c0_1 = arith.constant 0 : index
    %0 = vector.load %arg1[%c0, %c0_0, %c0_1] : memref<2x8x32xf32, #tpu.memory_space<vmem>>, vector<2x8x32xf32>
    %1 = vector.shape_cast %0 : vector<2x8x32xf32> to vector<16x32xf32>
    %c0_2 = arith.constant 0 : index
    %c0_3 = arith.constant 0 : index
    %2 = vector.load %arg2[%c0_2, %c0_3] : memref<32x16xf32, #tpu.memory_space<vmem>>, vector<32x16xf32>
    %cst = arith.constant dense<0.000000e+00> : vector<16x16xf32>
    %3 = tpu.matmul %1, %2, %cst {dimension_numbers = #tpu.dot_dimension_numbers<[1], [0], [0], [1], [0, 0, 1, 1], [], []>} : vector<16x32xf32>, vector<32x16xf32>, vector<16x16xf32> -> vector<16x16xf32>
    %4 = vector.shape_cast %3 : vector<16x16xf32> to vector<2x8x16xf32>
    %c0_4 = arith.constant 0 : index
    %c0_5 = arith.constant 0 : index
    %c0_6 = arith.constant 0 : index
    %5 = vector.load %arg6[%c0_4, %c0_5, %c0_6] : memref<2x8x16xf32, #tpu.memory_space<vmem>>, vector<2x8x16xf32>
    tpu.vector_store %arg6[%c0_4, %c0_5, %c0_6], %4 {strides = array<i32>} : memref<2x8x16xf32, #tpu.memory_space<vmem>>, vector<2x8x16xf32>,
    %cst_7 = arith.constant dense<0.000000e+00> : vector<2x16xf32>
    %6 = vector.multi_reduction <add>, %4, %cst_7 [1] : vector<2x8x16xf32> to vector<2x16xf32>
    %cst_8 = arith.constant 8.000000e+00 : f32
    %7 = vector.broadcast %cst_8 : f32 to vector<2x16xf32>
    %8 = arith.divf %6, %7 : vector<2x16xf32>
    %c0_9 = arith.constant 0 : index
    %c0_10 = arith.constant 0 : index
    %9 = vector.load %arg3[%c0_9, %c0_10] : memref<1x16xf32, #tpu.memory_space<vmem>>, vector<1x16xf32>
    %10 = vector.broadcast %9 : vector<1x16xf32> to vector<2x16xf32>
    %11 = arith.mulf %8, %10 : vector<2x16xf32>
    %c0_11 = arith.constant 0 : index
    %c0_12 = arith.constant 0 : index
    %12 = vector.load %arg4[%c0_11, %c0_12] : memref<1x16xf32, #tpu.memory_space<vmem>>, vector<1x16xf32>
    %13 = vector.broadcast %12 : vector<1x16xf32> to vector<2x16xf32>
    %14 = arith.subf %11, %13 : vector<2x16xf32>
    %c0_13 = arith.constant 0 : index
    %c0_14 = arith.constant 0 : index
    %15 = vector.load %arg5[%c0_13, %c0_14] : memref<2x16xf32, #tpu.memory_space<vmem>>, vector<2x16xf32>
    tpu.vector_store %arg5[%c0_13, %c0_14], %14 {strides = array<i32>} : memref<2x16xf32, #tpu.memory_space<vmem>>, vector<2x16xf32>,
    return
  }
  func.func @transform_0(%arg0: i32) -> (i32, i32, i32) {
    %c0_i32 = arith.constant 0 : i32
    %c0_i32_0 = arith.constant 0 : i32
    %c0_i32_1 = arith.constant 0 : i32
    return %arg0, %c0_i32, %c0_i32_0 : i32, i32, i32
  }
  func.func @transform_1(%arg0: i32) -> (i32, i32) {
    %c0_i32 = arith.constant 0 : i32
    %c0_i32_0 = arith.constant 0 : i32
    %c0_i32_1 = arith.constant 0 : i32
    return %c0_i32, %c0_i32_0 : i32, i32
  }
  func.func @transform_2(%arg0: i32) -> (i32, i32) {
    %c0_i32 = arith.constant 0 : i32
    %c0_i32_0 = arith.constant 0 : i32
    %c0_i32_1 = arith.constant 0 : i32
    return %c0_i32, %c0_i32_0 : i32, i32
  }
  func.func @transform_3(%arg0: i32) -> (i32, i32) {
    %c0_i32 = arith.constant 0 : i32
    %c0_i32_0 = arith.constant 0 : i32
    %c0_i32_1 = arith.constant 0 : i32
    return %c0_i32, %c0_i32_0 : i32, i32
  }
  func.func @transform_4(%arg0: i32) -> (i32, i32) {
    %c0_i32 = arith.constant 0 : i32
    %c0_i32_0 = arith.constant 0 : i32
    return %arg0, %c0_i32 : i32, i32
  }
  func.func @transform_5(%arg0: i32) -> (i32, i32, i32) {
    %c0_i32 = arith.constant 0 : i32
    %c0_i32_0 = arith.constant 0 : i32
    %c0_i32_1 = arith.constant 0 : i32
    return %arg0, %c0_i32, %c0_i32_0 : i32, i32, i32
  }
}

</mosaic_0001>

<llo_original>
// kernel: tpu_custom_call.1
$region0: #{tpu_custom_call.1}
  #allocation0 [shape = 'u32[]', space=smem, size = 0x4, offset = 0x4, fixed_abs, tag = 'smem constant byte address 0x4 - core index']
  #allocation1 [shape = 'u32[144,128]{1,0:T(1,128)}', space=vmem, size = 0x12000, scoped, tag = 'internal scratch']
  %s0 = inlined_call_operand.vmem [shape: f32[2,8,32], index: 0, kind: input, shape index: {}]
  %s1 = inlined_call_operand.vmem [shape: f32[32,16], index: 1, kind: input, shape index: {}]
  %s2 = inlined_call_operand.vmem [shape: f32[1,16], index: 2, kind: input, shape index: {}]
  %s3 = inlined_call_operand.vmem [shape: f32[1,16], index: 3, kind: input, shape index: {}]
  %s4 = inlined_call_operand.hbm [shape: f32[2,16], index: 4, kind: output, shape index: {0}]
  %s5 = inlined_call_operand.hbm [shape: f32[2,8,16], index: 5, kind: output, shape index: {1}]
  %6 = xla_tuple %s4, %s5
  %s7 = sld [smem:[#allocation0]]
  $region34: #{tpu_custom_call.1} parent=0
    _
  %s9 = ssub.s32 1, %s7
  %s10 = scalar_select 0, %s9, %s7
  $region1: #{tpu_custom_call.1} parent=0
    #allocation2 [shape = 'u8[1024]{0}', space=vmem, size = 0x400, scoped, tag = 'output window, operand 0, single buffered']
    #allocation3 [shape = 's32[1]{0}', space=sflag, size = 0x4, scoped, tag = 'scoped memory for tpu_custom_call.1']
    #allocation4 [shape = 'u8[8192]{0}', space=vmem, size = 0x2000, scoped, tag = 'output window, operand 1, single buffered']
    #allocation5 [shape = 's32[1]{0}', space=sflag, size = 0x4, scoped, tag = 'scoped memory for tpu_custom_call.1']
    %11 = vsyncpa [#allocation3], 0
    %12 = vsyncpa [#allocation5], 0
    // Predicated region
    $region2: #{tpu_custom_call.1} parent=1 // pred_check
      _
    $region3: #{tpu_custom_call.1} parent=1 // pred_check_branch
      %14 = sbr.rel (0) target = $region5
    $region4: #{tpu_custom_call.1} parent=1 // pred_region
      _
    $region5: #{tpu_custom_call.1} parent=1 // pred_fallthru
      _
    // Predicated region
    $region6: #{tpu_custom_call.1} parent=1 // pred_check
      _
    $region7: #{tpu_custom_call.1} parent=1 // pred_check_branch
      %16 = sbr.rel (0) target = $region9
    $region8: #{tpu_custom_call.1} parent=1 // pred_region
      _
    $region9: #{tpu_custom_call.1} parent=1 // pred_fallthru
      _
    // Predicated region
    $region10: #{tpu_custom_call.1} parent=1 // pred_check
      _
    $region11: #{tpu_custom_call.1} parent=1 // pred_check_branch
      %18 = sbr.rel (0) target = $region13
    $region12: #{tpu_custom_call.1} parent=1 // pred_region
      _
    $region13: #{tpu_custom_call.1} parent=1 // pred_fallthru
      _
    // Predicated region
    $region14: #{tpu_custom_call.1} parent=1 // pred_check
      _
    $region15: #{tpu_custom_call.1} parent=1 // pred_check_branch
      %20 = sbr.rel (0) target = $region17
    $region16: #{tpu_custom_call.1} parent=1 // pred_region
      _
    $region17: #{tpu_custom_call.1} parent=1 // pred_fallthru
      _
    %v21 = vld [vmem:[%s0] sm:$0xff]
    %v22 = vld [vmem:[%s0 + $0x8] sm:$0xff]
    %v23 = vld [vmem:[%s1] sm:$0xff]
    %v24 = vld [vmem:[%s1 + $0x8] sm:$0xff]
    %v25 = vld [vmem:[%s1 + $0x10] sm:$0xff]
    %v26 = vld [vmem:[%s1 + $0x18] sm:$0xff]
    %vm27 = vcmask 261120
    %v29 = vsel %vm27, %v21, 0
    %v32 = vsel %vm27, %v22, 0
    %34 = vmatprep.subr.mxu0 0.0
    %35 = vmatpush1.msra.mxu0 %v23
    %36 = vmatprep.subr.mxu0 0.0
    %37 = vmatpush1.msra.mxu0 %v24
    %38 = vmatprep.subr.mxu0 0.0
    %39 = vmatpush1.msra.mxu0 %v25
    %40 = vmatprep.subr.mxu0 0.0
    %41 = vmatpush1.msra.mxu0 %v26
    %42 = vmatprep.subr.mxu0 0.0
    %43 = vmatpush1.msra.mxu0 0.0
    %44 = vmatprep.subr.mxu0 0.0
    %45 = vmatpush1.msra.mxu0 0.0
    %46 = vmatprep.subr.mxu0 0.0
    %47 = vmatpush1.msra.mxu0 0.0
    %48 = vmatprep.subr.mxu0 0.0
    %49 = vmatpush1.msra.mxu0 0.0
    %50 = vmatprep.subr.mxu0 0.0
    %51 = vmatpush1.msra.mxu0 0.0
    %52 = vmatprep.subr.mxu0 0.0
    %53 = vmatpush1.msra.mxu0 0.0
    %54 = vmatprep.subr.mxu0 0.0
    %55 = vmatpush1.msra.mxu0 0.0
    %56 = vmatprep.subr.mxu0 0.0
    %57 = vmatpush1.msra.mxu0 0.0
    %58 = vmatprep.subr.mxu0 0.0
    %59 = vmatpush1.msra.mxu0 0.0
    %60 = vmatprep.subr.mxu0 0.0
    %61 = vmatpush1.msra.mxu0 0.0
    %62 = vmatprep.subr.mxu0 0.0
    %63 = vmatpush1.msra.mxu0 0.0
    %64 = vmatprep.subr.mxu0 0.0
    %65 = vmatpush1.msra.mxu0 0.0
    %66 = vmatprep.subr.mxu0 0.0
    %67 = vmatpush1.msra.mxu0 0.0
    %68 = vmatprep.subr.mxu0 0.0
    %69 = vmatpush1.msra.mxu0 0.0
    %70 = vmatprep.subr.mxu0 0.0
    %71 = vmatpush1.msra.mxu0 0.0
    %72 = vmatprep.subr.mxu0 0.0
    %73 = vmatpush1.msra.mxu0 0.0
    %74 = vmatprep.subr.mxu0 0.0
    %75 = vmatpush1.msra.mxu0 0.0
    %76 = vmatprep.subr.mxu0 0.0
    %77 = vmatpush1.msra.mxu0 0.0
    %78 = vmatprep.subr.mxu0 0.0
    %79 = vmatpush1.msra.mxu0 0.0
    %80 = vmatprep.subr.mxu0 0.0
    %81 = vmatpush1.msra.mxu0 0.0
    %82 = vmatprep.subr.mxu0 0.0
    %83 = vmatpush1.msra.mxu0 0.0
    %84 = vmatprep.subr.mxu0 0.0
    %85 = vmatpush1.msra.mxu0 0.0
    %86 = vmatprep.subr.mxu0 0.0
    %87 = vmatpush1.msra.mxu0 0.0
    %88 = vmatprep.subr.mxu0 0.0
    %89 = vmatpush1.msra.mxu0 0.0
    %90 = vmatprep.subr.mxu0 0.0
    %91 = vmatpush1.msra.mxu0 0.0
    %92 = vmatprep.subr.mxu0 0.0
    %93 = vmatpush1.msra.mxu0 0.0
    %94 = vmatprep.subr.mxu0 0.0
    %95 = vmatpush1.msra.mxu0 0.0
    %96 = vmatprep.subr.mxu0 0.0
    %97 = vmatpush1.msra.mxu0 0.0
    %98 = vmatprep.mubr.f32.mxu0 0.0
    %99 = vmatmul.mubr.f32.gmra.mrb[0].mxu0 %v29
    %v100 = vpop.f32.mrb[0].mxu0
    %v101 = vadd.f32 0.0, %v100
    %v102 = vpop.f32.mrb[0].mxu0
    %103 = vmatprep.mubr.f32.mxu0 0.0
    %104 = vmatmul.mubr.f32.gmra.mrb[0].mxu0 %v32
    %v105 = vpop.f32.mrb[0].mxu0
    %v106 = vadd.f32 0.0, %v105
    %v107 = vpop.f32.mrb[0].mxu0
    %108 = vdwg.mxu0
    %vm109 = vcmask 130048
    %110 = vst.msk [vmem:[#allocation4] sm:$0xff] %vm109, %v101
    %111 = vst.msk [vmem:[#allocation4 + $0x8] sm:$0xff] %vm109, %v106
    %v112 = vsel %vm109, %v101, 0.0
    %v113 = vrot.slane %v112, 4
    %v114 = vadd.f32 %v112, %v113
    %v115 = vrot.slane %v114, 2
    %v116 = vadd.f32 %v114, %v115
    %v117 = vrot.slane %v116, 1
    %v118 = vadd.f32 %v116, %v117
    %v119 = vsel %vm109, %v106, 0.0
    %v120 = vrot.slane %v119, 4
    %v121 = vadd.f32 %v119, %v120
    %v122 = vrot.slane %v121, 2
    %v123 = vadd.f32 %v121, %v122
    %v124 = vrot.slane %v123, 1
    %v125 = vadd.f32 %v123, %v124
    %v126 = vrcp.pop 8.0
    %v127 = vmul.f32 %v118, %v126
    %v128 = vmul.f32 %v125, %v126
    %v129 = vld [vmem:[%s2] sm:$0x1]
    %v131 = vlaneseq
    %v132 = vshrl.u32 %v131, 7
    %v133 = vsub.s32 0, %v132
    %v134 = vrot.slane %v129, %v133
    %v136 = vmul.f32 %v127, %v134
    %v137 = vmul.f32 %v128, %v134
    %v138 = vld [vmem:[%s3] sm:$0x1]
    %v140 = vlaneseq
    %v141 = vshrl.u32 %v140, 7
    %v142 = vsub.s32 0, %v141
    %v143 = vrot.slane %v138, %v142
    %v145 = vsub.f32 %v136, %v143
    %v146 = vsub.f32 %v137, %v143
    %v149 = vrot.slane %v146, 7
    %vm150 = vcmask 1041409
    %v151 = vsel %vm150, %v149, %v145
    %vm153 = vcmask 123904
    %154 = vst.msk [vmem:[#allocation2] sm:$0x3] %vm153, %v151
    // Predicated region
    $region18: #{tpu_custom_call.1} parent=1 // pred_check
      _
    $region19: #{tpu_custom_call.1} parent=1 // pred_check_branch
      %156 = sbr.rel (0) target = $region21
    $region20: #{tpu_custom_call.1} parent=1 // pred_region
      %s158 = ssub.s32 32, 32
      %159 = vsyncadd [#allocation3], %s158
      %s161 = sshll.u32 [#allocation2], 4
      %s162 = int_to_ptr.vmem [resolvable:$true] %s161
      %164 = dma.vmem_to_hbm [thread:$0]  %s162, 32, %s4, [#allocation3]
    $region21: #{tpu_custom_call.1} parent=1 // pred_fallthru
      _
    // Predicated region
    $region22: #{tpu_custom_call.1} parent=1 // pred_check
      _
    $region23: #{tpu_custom_call.1} parent=1 // pred_check_branch
      %166 = sbr.rel (0) target = $region25
    $region24: #{tpu_custom_call.1} parent=1 // pred_region
      %s168 = ssub.s32 256, 256
      %169 = vsyncadd [#allocation5], %s168
      %s170 = sshll.u32 [#allocation4], 4
      %s171 = int_to_ptr.vmem [resolvable:$true] %s170
      %176 = dma.vmem_to_hbm [thread:$0]  %s171, 256, %s5, [#allocation5], 128, 128, 8
    $region25: #{tpu_custom_call.1} parent=1 // pred_fallthru
      _
    // Predicated region
    $region26: #{tpu_custom_call.1} parent=1 // pred_check
      _
    $region27: #{tpu_custom_call.1} parent=1 // pred_check_branch
      %178 = sbr.rel (0) target = $region29
    $region28: #{tpu_custom_call.1} parent=1 // pred_region
      %179 = dma.done [#allocation3], 32
    $region29: #{tpu_custom_call.1} parent=1 // pred_fallthru
      _
    // Predicated region
    $region30: #{tpu_custom_call.1} parent=1 // pred_check
      _
    $region31: #{tpu_custom_call.1} parent=1 // pred_check_branch
      %181 = sbr.rel (0) target = $region33
    $region32: #{tpu_custom_call.1} parent=1 // pred_region
      %182 = dma.done [#allocation5], 256
    $region33: #{tpu_custom_call.1} parent=1 // pred_fallthru
      _
    %183 = vsyncpa [#allocation3], 1
    %184 = vsyncpa [#allocation5], 1

</llo_original>
